<compile_context>
chip_gen: v7x
topology: tpu7x:2x2x1
jax: 0.10.0
libtpu: 0.0.40
codegen_flags: <defaults>
</compile_context>

<pallas_src>
import math

import jax
import jax.numpy as jnp
from jax.experimental import pallas as pl
from jax.experimental.pallas import tpu as pltpu


def _round_up(a, b):
    return ((a + b - 1) // b) * b


# ---------------------------------------------------------------------------
# Kernel 1: XW = X @ W_pad  (cheap projection done once; keeps the operand
#           streamed through the big support-matmul narrow and lane-dense)
# ---------------------------------------------------------------------------
def xw_kernel(x_ref, w_ref, xw_ref):
    xw_ref[...] = jnp.dot(
        x_ref[...], w_ref[...], preferred_element_type=jnp.float32
    ).astype(xw_ref.dtype)


# ---------------------------------------------------------------------------
# Kernel 2: out = relu(l2_normalize(support @ XW)) with a tiled K-reduction
# ---------------------------------------------------------------------------
def gcn_kernel(a_ref, xw_ref, o_ref, acc_ref):
    k = pl.program_id(1)

    @pl.when(k == 0)
    def _():
        acc_ref[...] = jnp.zeros_like(acc_ref)

    acc_ref[...] += jnp.dot(
        a_ref[...], xw_ref[...], preferred_element_type=jnp.float32
    )

    @pl.when(k == pl.num_programs(1) - 1)
    def _():
        acc = acc_ref[...]
        # F.normalize(p=2, dim=-1, eps=1e-12) == x * rsqrt(max(sum(x^2), eps^2))
        sumsq = jnp.sum(acc * acc, axis=-1, keepdims=True)
        inv_norm = jax.lax.rsqrt(jnp.maximum(sumsq, 1e-24))  # EUP rsqrt, f32
        o_ref[...] = jnp.maximum(acc * inv_norm, 0.0).astype(o_ref.dtype)


def dense_gcn(support, x, weight, *, tile_m=128, tile_k=128):
    """Forward pass of Dense (order='AW', bias=False, embnormlize=True, ReLU)."""
    N, D_in = x.shape
    D_out = weight.shape[1]

    # Lane-dense output: pad D_out up to a multiple of 128 with zero columns.
    D_pad = max(128, _round_up(D_out, 128))
    # Pad N so both the row tile and the K tile divide evenly; zero-padded rows/cols
    # contribute nothing to the accumulation and are sliced off at the end.
    N_pad = _round_up(N, math.lcm(tile_m, tile_k))

    f32 = jnp.float32
    w_pad = jnp.zeros((D_in, D_pad), f32).at[:, :D_out].set(weight.astype(f32))
    x_pad = jnp.zeros((N_pad, D_in), f32).at[:N, :].set(x.astype(f32))
    a_pad = jnp.zeros((N_pad, N_pad), f32).at[:N, :N].set(support.astype(f32))

    # ---- Stage 1: XW = X @ W_pad ------------------------------------------------
    xw = pl.pallas_call(
        xw_kernel,
        out_shape=jax.ShapeDtypeStruct((N_pad, D_pad), f32),
        grid=(N_pad // tile_k,),
        in_specs=[
            pl.BlockSpec((tile_k, D_in), lambda i: (i, 0)),
            pl.BlockSpec((D_in, D_pad), lambda i: (0, 0)),
        ],
        out_specs=pl.BlockSpec((tile_k, D_pad), lambda i: (i, 0)),
        compiler_params=pltpu.CompilerParams(dimension_semantics=("parallel",)),
    )(x_pad, w_pad)

    # ---- Stage 2: tiled A @ XW with f32 accumulator + fused normalize/ReLU -------
    out_pad = pl.pallas_call(
        gcn_kernel,
        out_shape=jax.ShapeDtypeStruct((N_pad, D_pad), f32),
        grid=(N_pad // tile_m, N_pad // tile_k),  # K-reduction axis last
        in_specs=[
            pl.BlockSpec((tile_m, tile_k), lambda i, k: (i, k)),
            pl.BlockSpec((tile_k, D_pad), lambda i, k: (k, 0)),
        ],
        out_specs=pl.BlockSpec((tile_m, D_pad), lambda i, k: (i, 0)),
        scratch_shapes=[pltpu.VMEM((tile_m, D_pad), jnp.float32)],
        compiler_params=pltpu.CompilerParams(
            dimension_semantics=("parallel", "arbitrary"),
        ),
    )(a_pad, xw)

    return out_pad[:N, :D_out]


def xavier_uniform(key, shape, dtype=jnp.float32):
    fan_in, fan_out = shape
    bound = (6.0 / (fan_in + fan_out)) ** 0.5
    return jax.random.uniform(key, shape, dtype, minval=-bound, maxval=bound)


if __name__ == "__main__":
    key = jax.random.PRNGKey(0)
    k_x, k_a, k_w = jax.random.split(key, 3)

    # N deliberately not a multiple of the tile size to exercise the padding path,
    # and large enough for a multi-step (3x3) grid that tests the accumulator logic.
    N, D_in, D_out = 300, 32, 16

    x = jax.random.normal(k_x, (N, D_in), dtype=jnp.float32)
    support = jax.random.uniform(k_a, (N, N), dtype=jnp.float32)  # dense adjacency
    weight = xavier_uniform(k_w, (D_in, D_out))

    out = dense_gcn(support, x, weight)
    jax.block_until_ready(out)
    assert out.shape == (N, D_out)

    # Pure-JAX reference (original (A @ X) @ W association, highest precision).
    hp = jax.lax.Precision.HIGHEST
    pre = jnp.matmul(jnp.matmul(support, x, precision=hp), weight, precision=hp)
    norm = jnp.sqrt(jnp.sum(pre * pre, axis=-1, keepdims=True))
    ref = jnp.maximum(pre / jnp.maximum(norm, 1e-12), 0.0)

    # Slightly loosened tolerance: the kernel re-associates the matmul chain.
    assert jnp.allclose(out, ref, atol=5e-4, rtol=5e-4)

    print("KERNEL_OK")
</pallas_src>

<mosaic_0001>
module attributes {stable_mosaic.version = 11 : i64} {
  func.func @xw_kernel(%arg0: i32, %arg1: memref<128x32xf32, #tpu.memory_space<vmem>>, %arg2: memref<32x128xf32, #tpu.memory_space<vmem>>, %arg3: memref<128x128xf32, #tpu.memory_space<vmem>>) attributes {dimension_semantics = [#tpu.dimension_semantics<parallel>], iteration_bounds = array<i64: 3>, scalar_prefetch = 0 : i64, scratch_operands = 0 : i64, tpu.core_type = #tpu.core_type<tc>, window_params = [{transform_indices = @transform_0, window_bounds = array<i64: 128, 32>}, {pipeline_mode = #tpu.pipeline_mode<synchronous>, transform_indices = @transform_1, window_bounds = array<i64: 32, 128>}, {transform_indices = @transform_2, window_bounds = array<i64: 128, 128>}]} {
    %c0 = arith.constant 0 : index
    %c0_0 = arith.constant 0 : index
    %0 = vector.load %arg1[%c0, %c0_0] : memref<128x32xf32, #tpu.memory_space<vmem>>, vector<128x32xf32>
    %c0_1 = arith.constant 0 : index
    %c0_2 = arith.constant 0 : index
    %1 = vector.load %arg2[%c0_1, %c0_2] : memref<32x128xf32, #tpu.memory_space<vmem>>, vector<32x128xf32>
    %cst = arith.constant dense<0.000000e+00> : vector<128x128xf32>
    %2 = tpu.matmul %0, %1, %cst {dimension_numbers = #tpu.dot_dimension_numbers<[1], [0], [0], [1], [0, 0, 1, 1], [], []>} : vector<128x32xf32>, vector<32x128xf32>, vector<128x128xf32> -> vector<128x128xf32>
    %c0_3 = arith.constant 0 : index
    %c0_4 = arith.constant 0 : index
    %3 = vector.load %arg3[%c0_3, %c0_4] : memref<128x128xf32, #tpu.memory_space<vmem>>, vector<128x128xf32>
    tpu.vector_store %arg3[%c0_3, %c0_4], %2 {strides = array<i32>} : memref<128x128xf32, #tpu.memory_space<vmem>>, vector<128x128xf32>,
    return
  }
  func.func @transform_0(%arg0: i32) -> (i32, i32) {
    %c0_i32 = arith.constant 0 : i32
    %c0_i32_0 = arith.constant 0 : i32
    return %arg0, %c0_i32 : i32, i32
  }
  func.func @transform_1(%arg0: i32) -> (i32, i32) {
    %c0_i32 = arith.constant 0 : i32
    %c0_i32_0 = arith.constant 0 : i32
    %c0_i32_1 = arith.constant 0 : i32
    return %c0_i32, %c0_i32_0 : i32, i32
  }
  func.func @transform_2(%arg0: i32) -> (i32, i32) {
    %c0_i32 = arith.constant 0 : i32
    %c0_i32_0 = arith.constant 0 : i32
    return %arg0, %c0_i32 : i32, i32
  }
}

</mosaic_0001>

<llo_original>
// kernel: tpu_custom_call.1
$region0: #{tpu_custom_call.1}
  #allocation0 [shape = 'u32[]', space=smem, size = 0x4, offset = 0x4, fixed_abs, tag = 'smem constant byte address 0x4 - core index']
  #allocation1 [shape = 'u32[144,128]{1,0:T(1,128)}', space=vmem, size = 0x12000, scoped, tag = 'internal scratch']
  %s0 = inlined_call_operand.vmem [shape: f32[384,32], index: 0, kind: input, shape index: {}]
  %s1 = inlined_call_operand.vmem [shape: f32[32,128], index: 1, kind: input, shape index: {}]
  %s2 = inlined_call_operand.hbm [shape: f32[384,128], index: 2, kind: output, shape index: {}]
  %s3 = sld [smem:[#allocation0]]
  $region41: #{tpu_custom_call.1} parent=0
    _
  %s5 = ssub.s32 1, %s3
  %s6 = scalar_select 0, %s5, %s3
  $region1: #{tpu_custom_call.1} parent=0
    #allocation2 [shape = 'u8[131072]{0}', space=vmem, size = 0x20000, scoped, tag = 'output window, operand 0']
    #allocation3 [shape = 's32[2]{0}', space=sflag, size = 0x8, scoped, tag = 'scoped memory for tpu_custom_call.1']
    %7 = vsyncpa [#allocation3], 0
    %s8 = scalar_lea.sflag [#allocation3], 1
    %9 = vsyncpa %s8, 0
    loop: start=0, step=1, limit=5
    $region2: #{tpu_custom_call.1} parent=1 // loop_pre_header
      _
    $region3: #{tpu_custom_call.1} parent=1 // loop_header
      %s11 = sphi 0, %s15
      %p12 = scmp.ge.s32.totalorder %s11, 5
      %s21 = sphi 0, %s23
      %s24 = sphi 0, %s21
      %s25 = sphi 0, %s24
      %s41 = sphi 0, %s25
      %s45 = sphi 0, %s45
      %s47 = sphi 0, %s45
      %s48 = sphi 0, %s47
      %s62 = sphi 0, %s48
      %s68 = sphi 0, %s70
      %s71 = sphi 0, %s68
      %s72 = sphi 0, %s71
      %s88 = sphi 0, %s72
    $region4: #{tpu_custom_call.1} parent=1 // loop_header_branch
      %14 = sbr.rel (%p12) target = $region8
    $region5: #{tpu_custom_call.1} parent=1 // loop_body
      %s16 = ssub.s32 %s11, 1
      %s17 = ssub.s32 %s11, 2
      %s18 = sadd.s32 %s11, 1
      %s19 = ssub.s32 %s11, %s18
      %p20 = scmp.eq.s32.totalorder %s19, 0
      %s22 = sadd.s32 %s21, 1
      %s23 = scalar_select %p20, %s21, %s22
      %p26 = pneg %p20
      %p27 = scmp.eq.s32.totalorder %s11, 2
      %p28 = por %p26, %p27
      %p29 = scmp.ne.s32.totalorder %s21, %s24
      %p30 = scmp.eq.s32.totalorder %s11, 0
      %p31 = por %p29, %p30
      %p32 = scmp.ne.s32.totalorder %s21, %s24
      %p33 = scmp.eq.s32.totalorder %s16, 2
      %p34 = por %p32, %p33
      %p35 = scmp.ne.s32.totalorder %s24, %s25
      %p36 = scmp.eq.s32.totalorder %s16, 0
      %p37 = por %p35, %p36
      %p38 = scmp.ne.s32.totalorder %s24, %s25
      %p39 = scmp.eq.s32.totalorder %s17, 2
      %p40 = por %p38, %p39
      %p42 = scmp.ne.s32.totalorder %s25, %s41
      %p43 = scmp.eq.s32.totalorder %s17, 0
      %p44 = por %p42, %p43
      %s46 = sadd.s32 %s45, 1
      %p49 = scmp.eq.s32.totalorder %s11, 2
      %p50 = scmp.ne.s32.totalorder %s45, %s47
      %p51 = scmp.eq.s32.totalorder %s11, 0
      %p52 = por %p50, %p51
      %p53 = scmp.ne.s32.totalorder %s45, %s47
      %p54 = scmp.eq.s32.totalorder %s16, 2
      %p55 = por %p53, %p54
      %p56 = scmp.ne.s32.totalorder %s47, %s48
      %p57 = scmp.eq.s32.totalorder %s16, 0
      %p58 = por %p56, %p57
      %p59 = scmp.ne.s32.totalorder %s47, %s48
      %p60 = scmp.eq.s32.totalorder %s17, 2
      %p61 = por %p59, %p60
      %p63 = scmp.ne.s32.totalorder %s48, %s62
      %p64 = scmp.eq.s32.totalorder %s17, 0
      %p65 = por %p63, %p64
      %s66 = ssub.s32 %s11, %s18
      %p67 = scmp.eq.s32.totalorder %s66, 0
      %s69 = sadd.s32 %s68, 1
      %s70 = scalar_select %p67, %s68, %s69
      %p73 = pneg %p67
      %p74 = scmp.eq.s32.totalorder %s11, 2
      %p75 = por %p73, %p74
      %p76 = scmp.ne.s32.totalorder %s68, %s71
      %p77 = scmp.eq.s32.totalorder %s11, 0
      %p78 = por %p76, %p77
      %p79 = scmp.ne.s32.totalorder %s68, %s71
      %p80 = scmp.eq.s32.totalorder %s16, 2
      %p81 = por %p79, %p80
      %p82 = scmp.ne.s32.totalorder %s71, %s72
      %p83 = scmp.eq.s32.totalorder %s16, 0
      %p84 = por %p82, %p83
      %p85 = scmp.ne.s32.totalorder %s71, %s72
      %p86 = scmp.eq.s32.totalorder %s17, 2
      %p87 = por %p85, %p86
      %p89 = scmp.ne.s32.totalorder %s72, %s88
      %p90 = scmp.eq.s32.totalorder %s17, 0
      %p91 = por %p89, %p90
      %p92 = scmp.le.s32.totalorder 1, %s11
      %p93 = scmp.lt.s32.totalorder %s11, 4
      %p94 = pnand %p92, %p93
      %p95 = pneg %p94
      // Predicated region
      $region9: #{tpu_custom_call.1} parent=5 // pred_check
        _
      $region10: #{tpu_custom_call.1} parent=5 // pred_check_branch
        %97 = sbr.rel (%p94) target = $region12
      $region11: #{tpu_custom_call.1} parent=5 // pred_region
        %s98 = ssub.s32 %s11, 1
        // Predicated region
        $region13: #{tpu_custom_call.1} parent=11 // pred_check
          %p99 = pneg %p58
        $region14: #{tpu_custom_call.1} parent=11 // pred_check_branch
          %101 = sbr.rel (%p99) target = $region16
        $region15: #{tpu_custom_call.1} parent=11 // pred_region
          _
        $region16: #{tpu_custom_call.1} parent=11 // pred_fallthru
          _
      $region12: #{tpu_custom_call.1} parent=5 // pred_fallthru
        _
      %p102 = scmp.lt.s32.totalorder %s11, 3
      // Predicated region
      $region17: #{tpu_custom_call.1} parent=5 // pred_check
        %p103 = pneg %p102
      $region18: #{tpu_custom_call.1} parent=5 // pred_check_branch
        %105 = sbr.rel (%p103) target = $region20
      $region19: #{tpu_custom_call.1} parent=5 // pred_region
        // Predicated region
        $region21: #{tpu_custom_call.1} parent=19 // pred_check
          %p106 = pneg %p31
        $region22: #{tpu_custom_call.1} parent=19 // pred_check_branch
          %108 = sbr.rel (%p106) target = $region24
        $region23: #{tpu_custom_call.1} parent=19 // pred_region
          %s109 = smul.u32 16, %s11
          %p110 = scmp.lt.s32.totalorder %s109, 47
          %s111 = scalar_select %p110, %s109, 47
          %s112 = smul.addr %s111, 8
          %s113 = scalar_lea.vmem %s0, %s112
          %s114 = smul.u32 16, %s11
        $region24: #{tpu_custom_call.1} parent=19 // pred_fallthru
          _
      $region20: #{tpu_custom_call.1} parent=5 // pred_fallthru
        _
      %p115 = scmp.le.s32.totalorder 1, %s11
      %p116 = scmp.lt.s32.totalorder %s11, 4
      %p117 = pnand %p115, %p116
      %p118 = pneg %p117
      // Predicated region
      $region25: #{tpu_custom_call.1} parent=5 // pred_check
        _
      $region26: #{tpu_custom_call.1} parent=5 // pred_check_branch
        %120 = sbr.rel (%p117) target = $region28
      $region27: #{tpu_custom_call.1} parent=5 // pred_region
        %s121 = ssub.s32 %s11, 1
        %s122 = smul.u32 16, %s16
        %p123 = scmp.lt.s32.totalorder %s122, 47
        %s124 = scalar_select %p123, %s122, 47
        %s125 = smul.addr %s124, 8
        %s126 = scalar_lea.vmem %s0, %s125
        %p127 = pneg %p37
        %p128 = pneg %p34
        %p129 = pneg %p58
        %p130 = pneg %p55
        %p131 = pneg %p84
        %p132 = pneg %p81
        %s133 = sand.u32 %s71, 1
        %s134 = scalar_lea.sflag [#allocation3], %s133
        %s135 = sand.u32 %s71, 1
        %s136 = smul.addr %s135, 128
        %s137 = scalar_lea.vmem [#allocation2], %s136
        %s138 = smul.u32 16, %s16
        %p139 = scmp.lt.s32.totalorder %s138, 47
        %s140 = scalar_select %p139, %s138, 47
        %s141 = smul.addr %s140, 8
        %s142 = scalar_lea.vmem %s0, %s141
        %s143 = smul.u32 16, %s16
        %s144 = smul.u32 16, %s16
        %v145 = vld [vmem:[%s142] sm:$0xff]
        %v146 = vld [vmem:[%s142 + $0x8] sm:$0xff]
        %v147 = vld [vmem:[%s142 + $0x10] sm:$0xff]
        %v148 = vld [vmem:[%s142 + $0x18] sm:$0xff]
        %v149 = vld [vmem:[%s142 + $0x20] sm:$0xff]
        %v150 = vld [vmem:[%s142 + $0x28] sm:$0xff]
        %v151 = vld [vmem:[%s142 + $0x30] sm:$0xff]
        %v152 = vld [vmem:[%s142 + $0x38] sm:$0xff]
        %v153 = vld [vmem:[%s142 + $0x40] sm:$0xff]
        %v154 = vld [vmem:[%s142 + $0x48] sm:$0xff]
        %v155 = vld [vmem:[%s142 + $0x50] sm:$0xff]
        %v156 = vld [vmem:[%s142 + $0x58] sm:$0xff]
        %v157 = vld [vmem:[%s142 + $0x60] sm:$0xff]
        %v158 = vld [vmem:[%s142 + $0x68] sm:$0xff]
        %v159 = vld [vmem:[%s142 + $0x70] sm:$0xff]
        %v160 = vld [vmem:[%s142 + $0x78] sm:$0xff]
        %v161 = vld [vmem:[%s1] sm:$0xff]
        %v162 = vld [vmem:[%s1 + $0x8] sm:$0xff]
        %v163 = vld [vmem:[%s1 + $0x10] sm:$0xff]
        %v164 = vld [vmem:[%s1 + $0x18] sm:$0xff]
        %vm165 = vcmask 261120
        %v167 = vsel %vm165, %v145, 0
        %v170 = vsel %vm165, %v146, 0
        %v173 = vsel %vm165, %v147, 0
        %v176 = vsel %vm165, %v148, 0
        %v179 = vsel %vm165, %v149, 0
        %v182 = vsel %vm165, %v150, 0
        %v185 = vsel %vm165, %v151, 0
        %v188 = vsel %vm165, %v152, 0
        %v191 = vsel %vm165, %v153, 0
        %v194 = vsel %vm165, %v154, 0
        %v197 = vsel %vm165, %v155, 0
        %v200 = vsel %vm165, %v156, 0
        %v203 = vsel %vm165, %v157, 0
        %v206 = vsel %vm165, %v158, 0
        %v209 = vsel %vm165, %v159, 0
        %v212 = vsel %vm165, %v160, 0
        %214 = vmatprep.subr.mxu0 0.0
        %215 = vmatpush1.msra.mxu0 %v161
        %216 = vmatprep.subr.mxu0 0.0
        %217 = vmatpush1.msra.mxu0 %v162
        %218 = vmatprep.subr.mxu0 0.0
        %219 = vmatpush1.msra.mxu0 %v163
        %220 = vmatprep.subr.mxu0 0.0
        %221 = vmatpush1.msra.mxu0 %v164
        %222 = vmatprep.subr.mxu0 0.0
        %223 = vmatpush1.msra.mxu0 0.0
        %224 = vmatprep.subr.mxu0 0.0
        %225 = vmatpush1.msra.mxu0 0.0
        %226 = vmatprep.subr.mxu0 0.0
        %227 = vmatpush1.msra.mxu0 0.0
        %228 = vmatprep.subr.mxu0 0.0
        %229 = vmatpush1.msra.mxu0 0.0
        %230 = vmatprep.subr.mxu0 0.0
        %231 = vmatpush1.msra.mxu0 0.0
        %232 = vmatprep.subr.mxu0 0.0
        %233 = vmatpush1.msra.mxu0 0.0
        %234 = vmatprep.subr.mxu0 0.0
        %235 = vmatpush1.msra.mxu0 0.0
        %236 = vmatprep.subr.mxu0 0.0
        %237 = vmatpush1.msra.mxu0 0.0
        %238 = vmatprep.subr.mxu0 0.0
        %239 = vmatpush1.msra.mxu0 0.0
        %240 = vmatprep.subr.mxu0 0.0
        %241 = vmatpush1.msra.mxu0 0.0
        %242 = vmatprep.subr.mxu0 0.0
        %243 = vmatpush1.msra.mxu0 0.0
        %244 = vmatprep.subr.mxu0 0.0
        %245 = vmatpush1.msra.mxu0 0.0
        %246 = vmatprep.subr.mxu0 0.0
        %247 = vmatpush1.msra.mxu0 0.0
        %248 = vmatprep.subr.mxu0 0.0
        %249 = vmatpush1.msra.mxu0 0.0
        %250 = vmatprep.subr.mxu0 0.0
        %251 = vmatpush1.msra.mxu0 0.0
        %252 = vmatprep.subr.mxu0 0.0
        %253 = vmatpush1.msra.mxu0 0.0
        %254 = vmatprep.subr.mxu0 0.0
        %255 = vmatpush1.msra.mxu0 0.0
        %256 = vmatprep.subr.mxu0 0.0
        %257 = vmatpush1.msra.mxu0 0.0
        %258 = vmatprep.subr.mxu0 0.0
        %259 = vmatpush1.msra.mxu0 0.0
        %260 = vmatprep.subr.mxu0 0.0
        %261 = vmatpush1.msra.mxu0 0.0
        %262 = vmatprep.subr.mxu0 0.0
        %263 = vmatpush1.msra.mxu0 0.0
        %264 = vmatprep.subr.mxu0 0.0
        %265 = vmatpush1.msra.mxu0 0.0
        %266 = vmatprep.subr.mxu0 0.0
        %267 = vmatpush1.msra.mxu0 0.0
        %268 = vmatprep.subr.mxu0 0.0
        %269 = vmatpush1.msra.mxu0 0.0
        %270 = vmatprep.subr.mxu0 0.0
        %271 = vmatpush1.msra.mxu0 0.0
        %272 = vmatprep.subr.mxu0 0.0
        %273 = vmatpush1.msra.mxu0 0.0
        %274 = vmatprep.subr.mxu0 0.0
        %275 = vmatpush1.msra.mxu0 0.0
        %276 = vmatprep.subr.mxu0 0.0
        %277 = vmatpush1.msra.mxu0 0.0
        %278 = vmatprep.mubr.f32.mxu0 0.0
        %279 = vmatmul.mubr.f32.gmra.mrb[0].mxu0 %v167
        %v280 = vpop.f32.mrb[0].mxu0
        %v281 = vadd.f32 0.0, %v280
        %v282 = vpop.f32.mrb[0].mxu0
        %283 = vmatprep.mubr.f32.mxu0 0.0
        %284 = vmatmul.mubr.f32.gmra.mrb[0].mxu0 %v170
        %v285 = vpop.f32.mrb[0].mxu0
        %v286 = vadd.f32 0.0, %v285
        %v287 = vpop.f32.mrb[0].mxu0
        %288 = vmatprep.mubr.f32.mxu0 0.0
        %289 = vmatmul.mubr.f32.gmra.mrb[0].mxu0 %v173
        %v290 = vpop.f32.mrb[0].mxu0
        %v291 = vadd.f32 0.0, %v290
        %v292 = vpop.f32.mrb[0].mxu0
        %293 = vmatprep.mubr.f32.mxu0 0.0
        %294 = vmatmul.mubr.f32.gmra.mrb[0].mxu0 %v176
        %v295 = vpop.f32.mrb[0].mxu0
        %v296 = vadd.f32 0.0, %v295
        %v297 = vpop.f32.mrb[0].mxu0
        %298 = vmatprep.mubr.f32.mxu0 0.0
        %299 = vmatmul.mubr.f32.gmra.mrb[0].mxu0 %v179
        %v300 = vpop.f32.mrb[0].mxu0
        %v301 = vadd.f32 0.0, %v300
        %v302 = vpop.f32.mrb[0].mxu0
        %303 = vmatprep.mubr.f32.mxu0 0.0
        %304 = vmatmul.mubr.f32.gmra.mrb[0].mxu0 %v182
        %v305 = vpop.f32.mrb[0].mxu0
        %v306 = vadd.f32 0.0, %v305
        %v307 = vpop.f32.mrb[0].mxu0
        %308 = vmatprep.mubr.f32.mxu0 0.0
        %309 = vmatmul.mubr.f32.gmra.mrb[0].mxu0 %v185
        %v310 = vpop.f32.mrb[0].mxu0
        %v311 = vadd.f32 0.0, %v310
        %v312 = vpop.f32.mrb[0].mxu0
        %313 = vmatprep.mubr.f32.mxu0 0.0
        %314 = vmatmul.mubr.f32.gmra.mrb[0].mxu0 %v188
        %v315 = vpop.f32.mrb[0].mxu0
        %v316 = vadd.f32 0.0, %v315
        %v317 = vpop.f32.mrb[0].mxu0
        %318 = vmatprep.mubr.f32.mxu0 0.0
        %319 = vmatmul.mubr.f32.gmra.mrb[0].mxu0 %v191
        %v320 = vpop.f32.mrb[0].mxu0
        %v321 = vadd.f32 0.0, %v320
        %v322 = vpop.f32.mrb[0].mxu0
        %323 = vmatprep.mubr.f32.mxu0 0.0
        %324 = vmatmul.mubr.f32.gmra.mrb[0].mxu0 %v194
        %v325 = vpop.f32.mrb[0].mxu0
        %v326 = vadd.f32 0.0, %v325
        %v327 = vpop.f32.mrb[0].mxu0
        %328 = vmatprep.mubr.f32.mxu0 0.0
        %329 = vmatmul.mubr.f32.gmra.mrb[0].mxu0 %v197
        %v330 = vpop.f32.mrb[0].mxu0
        %v331 = vadd.f32 0.0, %v330
        %v332 = vpop.f32.mrb[0].mxu0
        %333 = vmatprep.mubr.f32.mxu0 0.0
        %334 = vmatmul.mubr.f32.gmra.mrb[0].mxu0 %v200
        %v335 = vpop.f32.mrb[0].mxu0
        %v336 = vadd.f32 0.0, %v335
        %v337 = vpop.f32.mrb[0].mxu0
        %338 = vmatprep.mubr.f32.mxu0 0.0
        %339 = vmatmul.mubr.f32.gmra.mrb[0].mxu0 %v203
        %v340 = vpop.f32.mrb[0].mxu0
        %v341 = vadd.f32 0.0, %v340
        %v342 = vpop.f32.mrb[0].mxu0
        %343 = vmatprep.mubr.f32.mxu0 0.0
        %344 = vmatmul.mubr.f32.gmra.mrb[0].mxu0 %v206
        %v345 = vpop.f32.mrb[0].mxu0
        %v346 = vadd.f32 0.0, %v345
        %v347 = vpop.f32.mrb[0].mxu0
        %348 = vmatprep.mubr.f32.mxu0 0.0
        %349 = vmatmul.mubr.f32.gmra.mrb[0].mxu0 %v209
        %v350 = vpop.f32.mrb[0].mxu0
        %v351 = vadd.f32 0.0, %v350
        %v352 = vpop.f32.mrb[0].mxu0
        %353 = vmatprep.mubr.f32.mxu0 0.0
        %354 = vmatmul.mubr.f32.gmra.mrb[0].mxu0 %v212
        %v355 = vpop.f32.mrb[0].mxu0
        %v356 = vadd.f32 0.0, %v355
        %v357 = vpop.f32.mrb[0].mxu0
        %358 = vdwg.mxu0
        %359 = vst [vmem:[%s137] sm:$0xff] %v281
        %360 = vst [vmem:[%s137 + $0x8] sm:$0xff] %v286
        %361 = vst [vmem:[%s137 + $0x10] sm:$0xff] %v291
        %362 = vst [vmem:[%s137 + $0x18] sm:$0xff] %v296
        %363 = vst [vmem:[%s137 + $0x20] sm:$0xff] %v301
        %364 = vst [vmem:[%s137 + $0x28] sm:$0xff] %v306
        %365 = vst [vmem:[%s137 + $0x30] sm:$0xff] %v311
        %366 = vst [vmem:[%s137 + $0x38] sm:$0xff] %v316
        %367 = vst [vmem:[%s137 + $0x40] sm:$0xff] %v321
        %368 = vst [vmem:[%s137 + $0x48] sm:$0xff] %v326
        %369 = vst [vmem:[%s137 + $0x50] sm:$0xff] %v331
        %370 = vst [vmem:[%s137 + $0x58] sm:$0xff] %v336
        %371 = vst [vmem:[%s137 + $0x60] sm:$0xff] %v341
        %372 = vst [vmem:[%s137 + $0x68] sm:$0xff] %v346
        %373 = vst [vmem:[%s137 + $0x70] sm:$0xff] %v351
        %374 = vst [vmem:[%s137 + $0x78] sm:$0xff] %v356
        %s375 = sand.u32 %s71, 1
        %s376 = scalar_lea.sflag [#allocation3], %s375
        %s377 = sand.u32 %s71, 1
        %s378 = smul.addr %s377, 128
        %s379 = scalar_lea.vmem [#allocation2], %s378
        // Predicated region
        $region29: #{tpu_custom_call.1} parent=27 // pred_check
          %p380 = pneg %p81
        $region30: #{tpu_custom_call.1} parent=27 // pred_check_branch
          %382 = sbr.rel (%p380) target = $region32
        $region31: #{tpu_custom_call.1} parent=27 // pred_region
          %s383 = smul.u32 16, %s16
          %s385 = ssub.s32 2048, 2048
          %386 = vsyncadd %s376, %s385
          %s387 = smul.addr %s383, 128
          %s388 = scalar_lea.hbm %s2, %s387
          %s389 = sshll.u32 %s379, 4
          %s390 = int_to_ptr.vmem [resolvable:$true] %s389
          %395 = dma.vmem_to_hbm [thread:$0]  %s390, 2048, %s388, %s376, 128, 128, 8
        $region32: #{tpu_custom_call.1} parent=27 // pred_fallthru
          _
      $region28: #{tpu_custom_call.1} parent=5 // pred_fallthru
        _
      %p396 = scmp.le.s32.totalorder 2, %s11
      // Predicated region
      $region33: #{tpu_custom_call.1} parent=5 // pred_check
        %p397 = pneg %p396
      $region34: #{tpu_custom_call.1} parent=5 // pred_check_branch
        %399 = sbr.rel (%p397) target = $region36
      $region35: #{tpu_custom_call.1} parent=5 // pred_region
        %s400 = ssub.s32 %s11, 2
        // Predicated region
        $region37: #{tpu_custom_call.1} parent=35 // pred_check
          %p401 = pneg %p87
        $region38: #{tpu_custom_call.1} parent=35 // pred_check_branch
          %403 = sbr.rel (%p401) target = $region40
        $region39: #{tpu_custom_call.1} parent=35 // pred_region
          %s404 = sand.u32 %s72, 1
          %s405 = scalar_lea.sflag [#allocation3], %s404
          %s406 = sand.u32 %s72, 1
          %s407 = smul.addr %s406, 128
          %s408 = scalar_lea.vmem [#allocation2], %s407
          %409 = dma.done %s405, 2048
        $region40: #{tpu_custom_call.1} parent=35 // pred_fallthru
          _
      $region36: #{tpu_custom_call.1} parent=5 // pred_fallthru
        _
    $region6: #{tpu_custom_call.1} parent=1 // loop_footer
      %s15 = sadd.s32 1, %s11
    $region7: #{tpu_custom_call.1} parent=1 // loop_footer_branch
      %10 = sbr.rel target = $region3
    $region8: #{tpu_custom_call.1} parent=1 // loop_exit
      _
    %410 = vsyncpa [#allocation3], 1
    %s411 = scalar_lea.sflag [#allocation3], 1
    %412 = vsyncpa %s411, 1

</llo_original>
